<compile_context>
chip_gen: v5e
topology: v5e:2x2
jax: 0.10.0
libtpu: 0.0.40
codegen_flags: <defaults>
</compile_context>

<pallas_src>
import functools

import jax
import jax.numpy as jnp
from jax.experimental import pallas as pl
from jax.experimental.pallas import tpu as pltpu


def _round_up(x, m):
    return ((x + m - 1) // m) * m


# ----------------------------- Pallas kernel -------------------------------

def _pointnet_kernel(x_ref, w1_ref, b1_ref, w2_ref, b2_ref, o_ref, *, tb, tn):
    """One (batch-group bi, N-tile ki) grid step.

    x_ref : (TB, TN, Cin) bf16  point tile for TB batch elements
    w1_ref: (Cin, H1P)    bf16  layer-1 weight (zero-padded to 128 lanes)
    b1_ref: (1, H1P)      f32
    w2_ref: (H1P, H2P)    bf16  layer-2 weight (zero-padded 128x128)
    b2_ref: (1, H2P)      f32
    o_ref : (TB, H2P)     f32   running max over N-tiles (resident accumulator)
    """
    ki = pl.program_id(1)
    cin = x_ref.shape[-1]

    # Flatten the batch group: one big matmul per layer instead of TB tiny ones.
    x = x_ref[...].reshape(tb * tn, cin)                    # (R, Cin) bf16

    # Layer 1 on the MXU (bf16 operands, f32 accumulation; Mosaic pads K=Cin).
    h1 = jnp.dot(x, w1_ref[...], preferred_element_type=jnp.float32)
    h1 = jnp.maximum(h1 + b1_ref[...], 0.0)                 # (R, H1P) f32

    # Layer 2 on the MXU (K = 128).
    h2 = jnp.dot(h1.astype(jnp.bfloat16), w2_ref[...],
                 preferred_element_type=jnp.float32)
    h2 = jnp.maximum(h2 + b2_ref[...], 0.0)                 # (R, H2P) f32

    # Per-batch-element max over this N tile.
    tile_max = jnp.max(h2.reshape(tb, tn, -1), axis=1)      # (TB, H2P) f32

    @pl.when(ki == 0)
    def _():
        o_ref[...] = tile_max                               # first tile: write

    @pl.when(ki != 0)
    def _():
        o_ref[...] = jnp.maximum(o_ref[...], tile_max)      # later tiles: max


@functools.partial(jax.jit, static_argnames=("out_dim",))
def pointnet_forward_raw(xyz, w1p, b1p, w2p, b2p, *, out_dim):
    """xyz: (B, N, Cin) -> (B, out_dim) max-pooled global feature."""
    B, N, Cin = xyz.shape
    H1P, H2P = w2p.shape

    # --- Tile sizing: ~2K flattened rows per grid step, (TB,128) dense output.
    TN = min(512, _round_up(N, 8))
    nN = pl.cdiv(N, TN)
    N_pad = nN * TN

    rows_target = 2048
    TB = max(8, (rows_target // TN) // 8 * 8)
    TB = min(TB, _round_up(B, 8))
    B_pad = _round_up(B, TB)
    nB = B_pad // TB

    # --- Pad by replicating edge points: duplicated real points never change
    # the max-pool, so no in-kernel tail masking is needed; padded batch rows
    # are sliced away below. bf16 halves the only large HBM stream.
    x_bf = jnp.pad(xyz.astype(jnp.bfloat16),
                   ((0, B_pad - B), (0, N_pad - N), (0, 0)), mode="edge")

    kernel = functools.partial(_pointnet_kernel, tb=TB, tn=TN)

    out = pl.pallas_call(
        kernel,
        out_shape=jax.ShapeDtypeStruct((B_pad, H2P), jnp.float32),
        grid_spec=pltpu.PrefetchScalarGridSpec(
            num_scalar_prefetch=0,
            grid=(nB, nN),
            in_specs=[
                pl.BlockSpec((TB, TN, Cin), lambda bi, ki: (bi, ki, 0)),
                pl.BlockSpec((Cin, H1P), lambda bi, ki: (0, 0)),
                pl.BlockSpec((1, H1P), lambda bi, ki: (0, 0)),
                pl.BlockSpec((H1P, H2P), lambda bi, ki: (0, 0)),
                pl.BlockSpec((1, H2P), lambda bi, ki: (0, 0)),
            ],
            out_specs=pl.BlockSpec((TB, H2P), lambda bi, ki: (bi, 0)),
        ),
        compiler_params=pltpu.CompilerParams(
            dimension_semantics=("parallel", "arbitrary"),
        ),
    )(x_bf, w1p, b1p, w2p, b2p)

    return out[:B, :out_dim]


# --------------------------- Module-equivalent ------------------------------

class PointBackbone:
    """JAX re-implementation of mani_skill_learn PointBackbone dispatch."""

    def __init__(self, cin=3, h1=32, h2=64, seed=0):
        k1, k2 = jax.random.split(jax.random.PRNGKey(seed))
        self.cin, self.h1, self.h2 = cin, h1, h2
        # Deterministic synthetic parameters (PyTorch Conv1d(Cin,H,1) weights,
        # stored transposed as (Cin, Cout) for channels-last matmul).
        self.w1 = (jax.random.normal(k1, (cin, h1), jnp.float32)
                   * (1.0 / jnp.sqrt(cin)))
        self.b1 = jnp.zeros((1, h1), jnp.float32)
        self.w2 = (jax.random.normal(k2, (h1, h2), jnp.float32)
                   * (1.0 / jnp.sqrt(h1)))
        self.b2 = jnp.zeros((1, h2), jnp.float32)

        # Hoisted per-call work: pad / cast parameters once at init.
        h1p = max(128, pl.cdiv(h1, 128) * 128)
        h2p = max(128, pl.cdiv(h2, 128) * 128)
        self.w1p = (jnp.zeros((cin, h1p), jnp.bfloat16)
                    .at[:, :h1].set(self.w1.astype(jnp.bfloat16)))
        self.b1p = jnp.zeros((1, h1p), jnp.float32).at[:, :h1].set(self.b1)
        self.w2p = (jnp.zeros((h1p, h2p), jnp.bfloat16)
                    .at[:h1, :h2].set(self.w2.astype(jnp.bfloat16)))
        self.b2p = jnp.zeros((1, h2p), jnp.float32).at[:, :h2].set(self.b2)

    def forward(self, pcd):
        # Exact dict re-keying semantics of the PyTorch base class.
        if isinstance(pcd, dict):
            pcd = dict(pcd)  # pcd.copy()
            if 'pointcloud' in pcd:
                _ = pcd['pointcloud']['xyz']  # temp (unused, mirrors reference)
                pcd['pcd'] = pcd['pointcloud']
                del pcd['pointcloud']
            assert 'pcd' in pcd
            return self.forward_raw(**pcd)
        else:
            return self.forward_raw(pcd)

    def forward_raw(self, pcd, state=None):
        # TODO(synk): base-class forward_raw is abstract (NotImplementedError);
        # this is the canonical concrete PointNet head used by its subclasses.
        xyz = pcd['xyz'] if isinstance(pcd, dict) else pcd
        feat = pointnet_forward_raw(xyz, self.w1p, self.b1p, self.w2p,
                                    self.b2p, out_dim=self.h2)
        if state is not None:
            # Subclasses concat state with pooled features (not kernel hot path).
            feat = jnp.concatenate([feat, state], axis=-1)
        return feat


# ---------------------------------- main ------------------------------------

if __name__ == "__main__":
    key = jax.random.PRNGKey(0)
    kx, ks = jax.random.split(key)

    B, N, Cin = 2, 64, 3          # batch=2, 64 points, xyz channels
    state_dim = 8

    xyz = jax.random.normal(kx, (B, N, Cin), jnp.float32)
    state = jax.random.normal(ks, (B, state_dim), jnp.float32)

    backbone = PointBackbone(cin=Cin, h1=32, h2=64, seed=0)

    # Dict input path (mirrors the {'pointcloud': {'xyz': ...}, 'state': ...} case)
    pcd_input = {'pointcloud': {'xyz': xyz}, 'state': state}
    out_dict = backbone.forward(pcd_input)
    jax.block_until_ready(out_dict)

    # Raw-array input path
    out_raw = backbone.forward(xyz)
    jax.block_until_ready(out_raw)

    assert out_dict.shape == (B, 64 + state_dim)
    assert out_raw.shape == (B, 64)

    # Pure-JAX reference mirroring the kernel's bf16 operand / f32-accumulate casts.
    xb = xyz.astype(jnp.bfloat16)
    ref_h1 = jnp.maximum(
        jnp.einsum('bnc,ch->bnh', xb, backbone.w1.astype(jnp.bfloat16),
                   preferred_element_type=jnp.float32) + backbone.b1[0], 0.0)
    ref_h2 = jnp.maximum(
        jnp.einsum('bnh,hk->bnk',
                   ref_h1.astype(jnp.bfloat16),
                   backbone.w2.astype(jnp.bfloat16),
                   preferred_element_type=jnp.float32) + backbone.b2[0], 0.0)
    ref = jnp.max(ref_h2, axis=1)
    assert jnp.allclose(out_raw, ref, atol=2e-2, rtol=2e-2), (
        float(jnp.max(jnp.abs(out_raw - ref))))

    print("KERNEL_OK")
</pallas_src>

<mosaic_0001>
module attributes {stable_mosaic.version = 11 : i64} {
  func.func @_pointnet_kernel(%arg0: i32, %arg1: i32, %arg2: memref<8x64x3xbf16, #tpu.memory_space<vmem>>, %arg3: memref<3x128xbf16, #tpu.memory_space<vmem>>, %arg4: memref<1x128xf32, #tpu.memory_space<vmem>>, %arg5: memref<128x128xbf16, #tpu.memory_space<vmem>>, %arg6: memref<1x128xf32, #tpu.memory_space<vmem>>, %arg7: memref<8x128xf32, #tpu.memory_space<vmem>>) attributes {dimension_semantics = [#tpu.dimension_semantics<parallel>, #tpu.dimension_semantics<arbitrary>], iteration_bounds = array<i64: 1, 1>, scalar_prefetch = 0 : i64, scratch_operands = 0 : i64, tpu.core_type = #tpu.core_type<tc>, window_params = [{transform_indices = @transform_0, window_bounds = array<i64: 8, 64, 3>}, {pipeline_mode = #tpu.pipeline_mode<synchronous>, transform_indices = @transform_1, window_bounds = array<i64: 3, 128>}, {pipeline_mode = #tpu.pipeline_mode<synchronous>, transform_indices = @transform_2, window_bounds = array<i64: 1, 128>}, {pipeline_mode = #tpu.pipeline_mode<synchronous>, transform_indices = @transform_3, window_bounds = array<i64: 128, 128>}, {pipeline_mode = #tpu.pipeline_mode<synchronous>, transform_indices = @transform_4, window_bounds = array<i64: 1, 128>}, {transform_indices = @transform_5, window_bounds = array<i64: 8, 128>}]} {
    %c0 = arith.constant 0 : index
    %c0_0 = arith.constant 0 : index
    %c0_1 = arith.constant 0 : index
    %0 = vector.load %arg2[%c0, %c0_0, %c0_1] : memref<8x64x3xbf16, #tpu.memory_space<vmem>>, vector<8x64x3xbf16>
    %1 = vector.shape_cast %0 : vector<8x64x3xbf16> to vector<512x3xbf16>
    %c0_2 = arith.constant 0 : index
    %c0_3 = arith.constant 0 : index
    %2 = vector.load %arg3[%c0_2, %c0_3] : memref<3x128xbf16, #tpu.memory_space<vmem>>, vector<3x128xbf16>
    %cst = arith.constant dense<0.000000e+00> : vector<512x128xf32>
    %3 = tpu.matmul %1, %2, %cst {dimension_numbers = #tpu.dot_dimension_numbers<[1], [0], [0], [1], [0, 0, 1, 1], [], []>} : vector<512x3xbf16>, vector<3x128xbf16>, vector<512x128xf32> -> vector<512x128xf32>
    %c0_4 = arith.constant 0 : index
    %c0_5 = arith.constant 0 : index
    %4 = vector.load %arg4[%c0_4, %c0_5] : memref<1x128xf32, #tpu.memory_space<vmem>>, vector<1x128xf32>
    %5 = vector.broadcast %4 : vector<1x128xf32> to vector<512x128xf32>
    %6 = arith.addf %3, %5 : vector<512x128xf32>
    %cst_6 = arith.constant 0.000000e+00 : f32
    %7 = vector.broadcast %cst_6 : f32 to vector<512x128xf32>
    %8 = arith.maximumf %6, %7 : vector<512x128xf32>
    %9 = arith.truncf %8 : vector<512x128xf32> to vector<512x128xbf16>
    %c0_7 = arith.constant 0 : index
    %c0_8 = arith.constant 0 : index
    %10 = vector.load %arg5[%c0_7, %c0_8] : memref<128x128xbf16, #tpu.memory_space<vmem>>, vector<128x128xbf16>
    %cst_9 = arith.constant dense<0.000000e+00> : vector<512x128xf32>
    %11 = tpu.matmul %9, %10, %cst_9 {dimension_numbers = #tpu.dot_dimension_numbers<[1], [0], [0], [1], [0, 0, 1, 1], [], []>} : vector<512x128xbf16>, vector<128x128xbf16>, vector<512x128xf32> -> vector<512x128xf32>
    %c0_10 = arith.constant 0 : index
    %c0_11 = arith.constant 0 : index
    %12 = vector.load %arg6[%c0_10, %c0_11] : memref<1x128xf32, #tpu.memory_space<vmem>>, vector<1x128xf32>
    %13 = vector.broadcast %12 : vector<1x128xf32> to vector<512x128xf32>
    %14 = arith.addf %11, %13 : vector<512x128xf32>
    %cst_12 = arith.constant 0.000000e+00 : f32
    %15 = vector.broadcast %cst_12 : f32 to vector<512x128xf32>
    %16 = arith.maximumf %14, %15 : vector<512x128xf32>
    %17 = vector.shape_cast %16 : vector<512x128xf32> to vector<8x64x128xf32>
    %cst_13 = arith.constant dense<0xFF800000> : vector<8x128xf32>
    %18 = vector.multi_reduction <maximumf>, %17, %cst_13 [1] : vector<8x64x128xf32> to vector<8x128xf32>
    %c0_i32 = arith.constant 0 : i32
    %19 = arith.cmpi eq, %arg1, %c0_i32 : i32
    %20 = arith.extui %19 : i1 to i32
    %c0_i32_14 = arith.constant 0 : i32
    %21 = arith.cmpi ne, %20, %c0_i32_14 : i32
    scf.if %21 {
      %c0_17 = arith.constant 0 : index
      %c0_18 = arith.constant 0 : index
      %25 = vector.load %arg7[%c0_17, %c0_18] : memref<8x128xf32, #tpu.memory_space<vmem>>, vector<8x128xf32>
      tpu.vector_store %arg7[%c0_17, %c0_18], %18 {strides = array<i32>} : memref<8x128xf32, #tpu.memory_space<vmem>>, vector<8x128xf32>,
    } else {
    }
    %c0_i32_15 = arith.constant 0 : i32
    %22 = arith.cmpi ne, %arg1, %c0_i32_15 : i32
    %23 = arith.extui %22 : i1 to i32
    %c0_i32_16 = arith.constant 0 : i32
    %24 = arith.cmpi ne, %23, %c0_i32_16 : i32
    scf.if %24 {
      %c0_17 = arith.constant 0 : index
      %c0_18 = arith.constant 0 : index
      %25 = vector.load %arg7[%c0_17, %c0_18] : memref<8x128xf32, #tpu.memory_space<vmem>>, vector<8x128xf32>
      %26 = arith.maximumf %25, %18 : vector<8x128xf32>
      %c0_19 = arith.constant 0 : index
      %c0_20 = arith.constant 0 : index
      %27 = vector.load %arg7[%c0_19, %c0_20] : memref<8x128xf32, #tpu.memory_space<vmem>>, vector<8x128xf32>
      tpu.vector_store %arg7[%c0_19, %c0_20], %26 {strides = array<i32>} : memref<8x128xf32, #tpu.memory_space<vmem>>, vector<8x128xf32>,
    } else {
    }
    return
  }
  func.func @transform_0(%arg0: i32, %arg1: i32) -> (i32, i32, i32) {
    %c0_i32 = arith.constant 0 : i32
    %c0_i32_0 = arith.constant 0 : i32
    return %arg0, %arg1, %c0_i32 : i32, i32, i32
  }
  func.func @transform_1(%arg0: i32, %arg1: i32) -> (i32, i32) {
    %c0_i32 = arith.constant 0 : i32
    %c0_i32_0 = arith.constant 0 : i32
    %c0_i32_1 = arith.constant 0 : i32
    return %c0_i32, %c0_i32_0 : i32, i32
  }
  func.func @transform_2(%arg0: i32, %arg1: i32) -> (i32, i32) {
    %c0_i32 = arith.constant 0 : i32
    %c0_i32_0 = arith.constant 0 : i32
    %c0_i32_1 = arith.constant 0 : i32
    return %c0_i32, %c0_i32_0 : i32, i32
  }
  func.func @transform_3(%arg0: i32, %arg1: i32) -> (i32, i32) {
    %c0_i32 = arith.constant 0 : i32
    %c0_i32_0 = arith.constant 0 : i32
    %c0_i32_1 = arith.constant 0 : i32
    return %c0_i32, %c0_i32_0 : i32, i32
  }
  func.func @transform_4(%arg0: i32, %arg1: i32) -> (i32, i32) {
    %c0_i32 = arith.constant 0 : i32
    %c0_i32_0 = arith.constant 0 : i32
    %c0_i32_1 = arith.constant 0 : i32
    return %c0_i32, %c0_i32_0 : i32, i32
  }
  func.func @transform_5(%arg0: i32, %arg1: i32) -> (i32, i32) {
    %c0_i32 = arith.constant 0 : i32
    %c0_i32_0 = arith.constant 0 : i32
    return %arg0, %c0_i32 : i32, i32
  }
}

</mosaic_0001>

<llo_original>
// kernel: pointnet_forward_raw.1
$region0: #{pointnet_forward_raw.1}
  #allocation0 [shape = 'u32[]', space=smem, size = 0x4, offset = 0x4, fixed_abs, tag = 'smem constant byte address 0x4 - core index']
  #allocation1 [shape = 'u32[72,128]{1,0:T(1,128)}', space=vmem, size = 0x9000, scoped, tag = 'internal scratch']
  %s0 = inlined_call_operand.vmem [shape: bf16[8,64,3], index: 0, kind: input, shape index: {}]
  %s1 = inlined_call_operand.vmem [shape: bf16[3,128], index: 1, kind: input, shape index: {}]
  %s2 = inlined_call_operand.vmem [shape: f32[1,128], index: 2, kind: input, shape index: {}]
  %s3 = inlined_call_operand.vmem [shape: bf16[128,128], index: 3, kind: input, shape index: {}]
  %s4 = inlined_call_operand.vmem [shape: f32[1,128], index: 4, kind: input, shape index: {}]
  %s5 = inlined_call_operand.vmem [shape: f32[8,128], index: 5, kind: output, shape index: {}]
  %s6 = sld [smem:[#allocation0]]
  $region38: #{pointnet_forward_raw.1} parent=0
    _
  %s8 = ssub.s32 1, %s6
  %s9 = scalar_select 0, %s8, %s6
  // Predicated region
  $region2: #{pointnet_forward_raw.1} parent=0 // pred_check
    _
  $region3: #{pointnet_forward_raw.1} parent=0 // pred_check_branch
    %11 = sbr.rel (0) target = $region5
  $region4: #{pointnet_forward_raw.1} parent=0 // pred_region
    _
  $region5: #{pointnet_forward_raw.1} parent=0 // pred_fallthru
    _
  // Predicated region
  $region6: #{pointnet_forward_raw.1} parent=0 // pred_check
    _
  $region7: #{pointnet_forward_raw.1} parent=0 // pred_check_branch
    %13 = sbr.rel (0) target = $region9
  $region8: #{pointnet_forward_raw.1} parent=0 // pred_region
    _
  $region9: #{pointnet_forward_raw.1} parent=0 // pred_fallthru
    _
  // Predicated region
  $region10: #{pointnet_forward_raw.1} parent=0 // pred_check
    _
  $region11: #{pointnet_forward_raw.1} parent=0 // pred_check_branch
    %15 = sbr.rel (0) target = $region13
  $region12: #{pointnet_forward_raw.1} parent=0 // pred_region
    _
  $region13: #{pointnet_forward_raw.1} parent=0 // pred_fallthru
    _
  // Predicated region
  $region14: #{pointnet_forward_raw.1} parent=0 // pred_check
    _
  $region15: #{pointnet_forward_raw.1} parent=0 // pred_check_branch
    %17 = sbr.rel (0) target = $region17
  $region16: #{pointnet_forward_raw.1} parent=0 // pred_region
    _
  $region17: #{pointnet_forward_raw.1} parent=0 // pred_fallthru
    _
  // Predicated region
  $region18: #{pointnet_forward_raw.1} parent=0 // pred_check
    _
  $region19: #{pointnet_forward_raw.1} parent=0 // pred_check_branch
    %19 = sbr.rel (0) target = $region21
  $region20: #{pointnet_forward_raw.1} parent=0 // pred_region
    _
  $region21: #{pointnet_forward_raw.1} parent=0 // pred_fallthru
    _
  %v21 = vld [vmem:[%s0] sm:$0xf]
  %v22 = vld [vmem:[%s0 + $0x4] sm:$0xf]
  %v23 = vld [vmem:[%s0 + $0x8] sm:$0xf]
  %v24 = vld [vmem:[%s0 + $0xc] sm:$0xf]
  %v25 = vld [vmem:[%s0 + $0x10] sm:$0xf]
  %v26 = vld [vmem:[%s0 + $0x14] sm:$0xf]
  %v27 = vld [vmem:[%s0 + $0x18] sm:$0xf]
  %v28 = vld [vmem:[%s0 + $0x1c] sm:$0xf]
  %v29 = vld [vmem:[%s0 + $0x20] sm:$0xf]
  %v30 = vld [vmem:[%s0 + $0x24] sm:$0xf]
  %v31 = vld [vmem:[%s0 + $0x28] sm:$0xf]
  %v32 = vld [vmem:[%s0 + $0x2c] sm:$0xf]
  %v33 = vld [vmem:[%s0 + $0x30] sm:$0xf]
  %v34 = vld [vmem:[%s0 + $0x34] sm:$0xf]
  %v35 = vld [vmem:[%s0 + $0x38] sm:$0xf]
  %v36 = vld [vmem:[%s0 + $0x3c] sm:$0xf]
  %v37 = vld [vmem:[%s0 + $0x40] sm:$0xf]
  %v38 = vld [vmem:[%s0 + $0x44] sm:$0xf]
  %v39 = vld [vmem:[%s0 + $0x48] sm:$0xf]
  %v40 = vld [vmem:[%s0 + $0x4c] sm:$0xf]
  %v41 = vld [vmem:[%s0 + $0x50] sm:$0xf]
  %v42 = vld [vmem:[%s0 + $0x54] sm:$0xf]
  %v43 = vld [vmem:[%s0 + $0x58] sm:$0xf]
  %v44 = vld [vmem:[%s0 + $0x5c] sm:$0xf]
  %v45 = vld [vmem:[%s0 + $0x60] sm:$0xf]
  %v46 = vld [vmem:[%s0 + $0x64] sm:$0xf]
  %v47 = vld [vmem:[%s0 + $0x68] sm:$0xf]
  %v48 = vld [vmem:[%s0 + $0x6c] sm:$0xf]
  %v49 = vld [vmem:[%s0 + $0x70] sm:$0xf]
  %v50 = vld [vmem:[%s0 + $0x74] sm:$0xf]
  %v51 = vld [vmem:[%s0 + $0x78] sm:$0xf]
  %v52 = vld [vmem:[%s0 + $0x7c] sm:$0xf]
  %v53 = vld [vmem:[%s0 + $0x80] sm:$0xf]
  %v54 = vld [vmem:[%s0 + $0x84] sm:$0xf]
  %v55 = vld [vmem:[%s0 + $0x88] sm:$0xf]
  %v56 = vld [vmem:[%s0 + $0x8c] sm:$0xf]
  %v57 = vld [vmem:[%s0 + $0x90] sm:$0xf]
  %v58 = vld [vmem:[%s0 + $0x94] sm:$0xf]
  %v59 = vld [vmem:[%s0 + $0x98] sm:$0xf]
  %v60 = vld [vmem:[%s0 + $0x9c] sm:$0xf]
  %v61 = vld [vmem:[%s0 + $0xa0] sm:$0xf]
  %v62 = vld [vmem:[%s0 + $0xa4] sm:$0xf]
  %v63 = vld [vmem:[%s0 + $0xa8] sm:$0xf]
  %v64 = vld [vmem:[%s0 + $0xac] sm:$0xf]
  %v65 = vld [vmem:[%s0 + $0xb0] sm:$0xf]
  %v66 = vld [vmem:[%s0 + $0xb4] sm:$0xf]
  %v67 = vld [vmem:[%s0 + $0xb8] sm:$0xf]
  %v68 = vld [vmem:[%s0 + $0xbc] sm:$0xf]
  %v69 = vld [vmem:[%s0 + $0xc0] sm:$0xf]
  %v70 = vld [vmem:[%s0 + $0xc4] sm:$0xf]
  %v71 = vld [vmem:[%s0 + $0xc8] sm:$0xf]
  %v72 = vld [vmem:[%s0 + $0xcc] sm:$0xf]
  %v73 = vld [vmem:[%s0 + $0xd0] sm:$0xf]
  %v74 = vld [vmem:[%s0 + $0xd4] sm:$0xf]
  %v75 = vld [vmem:[%s0 + $0xd8] sm:$0xf]
  %v76 = vld [vmem:[%s0 + $0xdc] sm:$0xf]
  %v77 = vld [vmem:[%s0 + $0xe0] sm:$0xf]
  %v78 = vld [vmem:[%s0 + $0xe4] sm:$0xf]
  %v79 = vld [vmem:[%s0 + $0xe8] sm:$0xf]
  %v80 = vld [vmem:[%s0 + $0xec] sm:$0xf]
  %v81 = vld [vmem:[%s0 + $0xf0] sm:$0xf]
  %v82 = vld [vmem:[%s0 + $0xf4] sm:$0xf]
  %v83 = vld [vmem:[%s0 + $0xf8] sm:$0xf]
  %v84 = vld [vmem:[%s0 + $0xfc] sm:$0xf]
  %v85 = vld [vmem:[%s1] sm:$0x3]
  %v86 = vld [vmem:[%s2] sm:$0x1]
  %v88 = vperm.slane %v86, 0
  %v154 = vunpack.c.l.b16 %v21
  %v155 = vunpack.c.l.b16 %v22
  %v156 = vunpack.c.l.b16 %v23
  %v157 = vunpack.c.l.b16 %v24
  %v158 = vunpack.c.l.b16 %v25
  %v159 = vunpack.c.l.b16 %v26
  %v160 = vunpack.c.l.b16 %v27
  %v161 = vunpack.c.l.b16 %v28
  %v162 = vunpack.c.l.b16 %v29
  %v163 = vunpack.c.l.b16 %v30
  %v164 = vunpack.c.l.b16 %v31
  %v165 = vunpack.c.l.b16 %v32
  %v166 = vunpack.c.l.b16 %v33
  %v167 = vunpack.c.l.b16 %v34
  %v168 = vunpack.c.l.b16 %v35
  %v169 = vunpack.c.l.b16 %v36
  %v170 = vunpack.c.l.b16 %v37
  %v171 = vunpack.c.l.b16 %v38
  %v172 = vunpack.c.l.b16 %v39
  %v173 = vunpack.c.l.b16 %v40
  %v174 = vunpack.c.l.b16 %v41
  %v175 = vunpack.c.l.b16 %v42
  %v176 = vunpack.c.l.b16 %v43
  %v177 = vunpack.c.l.b16 %v44
  %v178 = vunpack.c.l.b16 %v45
  %v179 = vunpack.c.l.b16 %v46
  %v180 = vunpack.c.l.b16 %v47
  %v181 = vunpack.c.l.b16 %v48
  %v182 = vunpack.c.l.b16 %v49
  %v183 = vunpack.c.l.b16 %v50
  %v184 = vunpack.c.l.b16 %v51
  %v185 = vunpack.c.l.b16 %v52
  %v186 = vunpack.c.l.b16 %v53
  %v187 = vunpack.c.l.b16 %v54
  %v188 = vunpack.c.l.b16 %v55
  %v189 = vunpack.c.l.b16 %v56
  %v190 = vunpack.c.l.b16 %v57
  %v191 = vunpack.c.l.b16 %v58
  %v192 = vunpack.c.l.b16 %v59
  %v193 = vunpack.c.l.b16 %v60
  %v194 = vunpack.c.l.b16 %v61
  %v195 = vunpack.c.l.b16 %v62
  %v196 = vunpack.c.l.b16 %v63
  %v197 = vunpack.c.l.b16 %v64
  %v198 = vunpack.c.l.b16 %v65
  %v199 = vunpack.c.l.b16 %v66
  %v200 = vunpack.c.l.b16 %v67
  %v201 = vunpack.c.l.b16 %v68
  %v202 = vunpack.c.l.b16 %v69
  %v203 = vunpack.c.l.b16 %v70
  %v204 = vunpack.c.l.b16 %v71
  %v205 = vunpack.c.l.b16 %v72
  %v206 = vunpack.c.l.b16 %v73
  %v207 = vunpack.c.l.b16 %v74
  %v208 = vunpack.c.l.b16 %v75
  %v209 = vunpack.c.l.b16 %v76
  %v210 = vunpack.c.l.b16 %v77
  %v211 = vunpack.c.l.b16 %v78
  %v212 = vunpack.c.l.b16 %v79
  %v213 = vunpack.c.l.b16 %v80
  %v214 = vunpack.c.l.b16 %v81
  %v215 = vunpack.c.l.b16 %v82
  %v216 = vunpack.c.l.b16 %v83
  %v217 = vunpack.c.l.b16 %v84
  %v218 = vpack.c.b16 %v155, %v154
  %v219 = vpack.c.b16 %v157, %v156
  %v220 = vpack.c.b16 %v159, %v158
  %v221 = vpack.c.b16 %v161, %v160
  %v222 = vpack.c.b16 %v163, %v162
  %v223 = vpack.c.b16 %v165, %v164
  %v224 = vpack.c.b16 %v167, %v166
  %v225 = vpack.c.b16 %v169, %v168
  %v226 = vpack.c.b16 %v171, %v170
  %v227 = vpack.c.b16 %v173, %v172
  %v228 = vpack.c.b16 %v175, %v174
  %v229 = vpack.c.b16 %v177, %v176
  %v230 = vpack.c.b16 %v179, %v178
  %v231 = vpack.c.b16 %v181, %v180
  %v232 = vpack.c.b16 %v183, %v182
  %v233 = vpack.c.b16 %v185, %v184
  %v234 = vpack.c.b16 %v187, %v186
  %v235 = vpack.c.b16 %v189, %v188
  %v236 = vpack.c.b16 %v191, %v190
  %v237 = vpack.c.b16 %v193, %v192
  %v238 = vpack.c.b16 %v195, %v194
  %v239 = vpack.c.b16 %v197, %v196
  %v240 = vpack.c.b16 %v199, %v198
  %v241 = vpack.c.b16 %v201, %v200
  %v242 = vpack.c.b16 %v203, %v202
  %v243 = vpack.c.b16 %v205, %v204
  %v244 = vpack.c.b16 %v207, %v206
  %v245 = vpack.c.b16 %v209, %v208
  %v246 = vpack.c.b16 %v211, %v210
  %v247 = vpack.c.b16 %v213, %v212
  %v248 = vpack.c.b16 %v215, %v214
  %v249 = vpack.c.b16 %v217, %v216
  %vm250 = vcmask 23552
  %v252 = vsel %vm250, %v218, 0
  %v255 = vsel %vm250, %v219, 0
  %v258 = vsel %vm250, %v220, 0
  %v261 = vsel %vm250, %v221, 0
  %v264 = vsel %vm250, %v222, 0
  %v267 = vsel %vm250, %v223, 0
  %v270 = vsel %vm250, %v224, 0
  %v273 = vsel %vm250, %v225, 0
  %v276 = vsel %vm250, %v226, 0
  %v279 = vsel %vm250, %v227, 0
  %v282 = vsel %vm250, %v228, 0
  %v285 = vsel %vm250, %v229, 0
  %v288 = vsel %vm250, %v230, 0
  %v291 = vsel %vm250, %v231, 0
  %v294 = vsel %vm250, %v232, 0
  %v297 = vsel %vm250, %v233, 0
  %v300 = vsel %vm250, %v234, 0
  %v303 = vsel %vm250, %v235, 0
  %v306 = vsel %vm250, %v236, 0
  %v309 = vsel %vm250, %v237, 0
  %v312 = vsel %vm250, %v238, 0
  %v315 = vsel %vm250, %v239, 0
  %v318 = vsel %vm250, %v240, 0
  %v321 = vsel %vm250, %v241, 0
  %v324 = vsel %vm250, %v242, 0
  %v327 = vsel %vm250, %v243, 0
  %v330 = vsel %vm250, %v244, 0
  %v333 = vsel %vm250, %v245, 0
  %v336 = vsel %vm250, %v246, 0
  %v339 = vsel %vm250, %v247, 0
  %v342 = vsel %vm250, %v248, 0
  %v345 = vsel %vm250, %v249, 0
  %vm347 = vcmask 1040384
  %vm348 = vcmask 1041408
  %v349 = vsel %vm347, 4294967295, 65535
  %v350 = vsel %vm348, %v349, 0
  %v352 = vand.u32 %v85, %v350
  %354 = vmatpush.bf16.msra.mxu0 0
  %355 = vmatpush.bf16.msra.mxu0 0
  %356 = vmatpush.bf16.msra.mxu0 0
  %357 = vmatpush.bf16.msra.mxu0 0
  %358 = vmatpush.bf16.msra.mxu0 0
  %359 = vmatpush.bf16.msra.mxu0 0
  %360 = vmatpush.bf16.msra.mxu0 0
  %361 = vmatpush.bf16.msra.mxu0 %v352
  %362 = vmatmul.bf16.gmra.mxu0 %v252
  %v363 = vpop.f32.mrf.mxu0
  %v364 = vadd.f32 %v88, %v363
  %v365 = vpop.f32.mrf.mxu0
  %v366 = vadd.f32 %v88, %v365
  %367 = vmatmul.bf16.gmra.mxu0 %v255
  %v368 = vpop.f32.mrf.mxu0
  %v369 = vadd.f32 %v88, %v368
  %v370 = vpop.f32.mrf.mxu0
  %v371 = vadd.f32 %v88, %v370
  %372 = vmatmul.bf16.gmra.mxu0 %v258
  %v373 = vpop.f32.mrf.mxu0
  %v374 = vadd.f32 %v88, %v373
  %v375 = vpop.f32.mrf.mxu0
  %v376 = vadd.f32 %v88, %v375
  %377 = vmatmul.bf16.gmra.mxu0 %v261
  %v378 = vpop.f32.mrf.mxu0
  %v379 = vadd.f32 %v88, %v378
  %v380 = vpop.f32.mrf.mxu0
  %v381 = vadd.f32 %v88, %v380
  %382 = vmatmul.bf16.gmra.mxu0 %v264
  %v383 = vpop.f32.mrf.mxu0
  %v384 = vadd.f32 %v88, %v383
  %v385 = vpop.f32.mrf.mxu0
  %v386 = vadd.f32 %v88, %v385
  %387 = vmatmul.bf16.gmra.mxu0 %v267
  %v388 = vpop.f32.mrf.mxu0
  %v389 = vadd.f32 %v88, %v388
  %v390 = vpop.f32.mrf.mxu0
  %v391 = vadd.f32 %v88, %v390
  %392 = vmatmul.bf16.gmra.mxu0 %v270
  %v393 = vpop.f32.mrf.mxu0
  %v394 = vadd.f32 %v88, %v393
  %v395 = vpop.f32.mrf.mxu0
  %v396 = vadd.f32 %v88, %v395
  %397 = vmatmul.bf16.gmra.mxu0 %v273
  %v398 = vpop.f32.mrf.mxu0
  %v399 = vadd.f32 %v88, %v398
  %v400 = vpop.f32.mrf.mxu0
  %v401 = vadd.f32 %v88, %v400
  %402 = vmatmul.bf16.gmra.mxu0 %v276
  %v403 = vpop.f32.mrf.mxu0
  %v404 = vadd.f32 %v88, %v403
  %v405 = vpop.f32.mrf.mxu0
  %v406 = vadd.f32 %v88, %v405
  %407 = vmatmul.bf16.gmra.mxu0 %v279
  %v408 = vpop.f32.mrf.mxu0
  %v409 = vadd.f32 %v88, %v408
  %v410 = vpop.f32.mrf.mxu0
  %v411 = vadd.f32 %v88, %v410
  %412 = vmatmul.bf16.gmra.mxu0 %v282
  %v413 = vpop.f32.mrf.mxu0
  %v414 = vadd.f32 %v88, %v413
  %v415 = vpop.f32.mrf.mxu0
  %v416 = vadd.f32 %v88, %v415
  %417 = vmatmul.bf16.gmra.mxu0 %v285
  %v418 = vpop.f32.mrf.mxu0
  %v419 = vadd.f32 %v88, %v418
  %v420 = vpop.f32.mrf.mxu0
  %v421 = vadd.f32 %v88, %v420
  %422 = vmatmul.bf16.gmra.mxu0 %v288
  %v423 = vpop.f32.mrf.mxu0
  %v424 = vadd.f32 %v88, %v423
  %v425 = vpop.f32.mrf.mxu0
  %v426 = vadd.f32 %v88, %v425
  %427 = vmatmul.bf16.gmra.mxu0 %v291
  %v428 = vpop.f32.mrf.mxu0
  %v429 = vadd.f32 %v88, %v428
  %v430 = vpop.f32.mrf.mxu0
  %v431 = vadd.f32 %v88, %v430
  %432 = vmatmul.bf16.gmra.mxu0 %v294
  %v433 = vpop.f32.mrf.mxu0
  %v434 = vadd.f32 %v88, %v433
  %v435 = vpop.f32.mrf.mxu0
  %v436 = vadd.f32 %v88, %v435
  %437 = vmatmul.bf16.gmra.mxu0 %v297
  %v438 = vpop.f32.mrf.mxu0
  %v439 = vadd.f32 %v88, %v438
  %v440 = vpop.f32.mrf.mxu0
  %v441 = vadd.f32 %v88, %v440
  %442 = vmatmul.bf16.gmra.mxu0 %v300
  %v443 = vpop.f32.mrf.mxu0
  %v444 = vadd.f32 %v88, %v443
  %v445 = vpop.f32.mrf.mxu0
  %v446 = vadd.f32 %v88, %v445
  %447 = vmatmul.bf16.gmra.mxu0 %v303
  %v448 = vpop.f32.mrf.mxu0
  %v449 = vadd.f32 %v88, %v448
  %v450 = vpop.f32.mrf.mxu0
  %v451 = vadd.f32 %v88, %v450
  %452 = vmatmul.bf16.gmra.mxu0 %v306
  %v453 = vpop.f32.mrf.mxu0
  %v454 = vadd.f32 %v88, %v453
  %v455 = vpop.f32.mrf.mxu0
  %v456 = vadd.f32 %v88, %v455
  %457 = vmatmul.bf16.gmra.mxu0 %v309
  %v458 = vpop.f32.mrf.mxu0
  %v459 = vadd.f32 %v88, %v458
  %v460 = vpop.f32.mrf.mxu0
  %v461 = vadd.f32 %v88, %v460
  %462 = vmatmul.bf16.gmra.mxu0 %v312
  %v463 = vpop.f32.mrf.mxu0
  %v464 = vadd.f32 %v88, %v463
  %v465 = vpop.f32.mrf.mxu0
  %v466 = vadd.f32 %v88, %v465
  %467 = vmatmul.bf16.gmra.mxu0 %v315
  %v468 = vpop.f32.mrf.mxu0
  %v469 = vadd.f32 %v88, %v468
  %v470 = vpop.f32.mrf.mxu0
  %v471 = vadd.f32 %v88, %v470
  %472 = vmatmul.bf16.gmra.mxu0 %v318
  %v473 = vpop.f32.mrf.mxu0
  %v474 = vadd.f32 %v88, %v473
  %v475 = vpop.f32.mrf.mxu0
  %v476 = vadd.f32 %v88, %v475
  %477 = vmatmul.bf16.gmra.mxu0 %v321
  %v478 = vpop.f32.mrf.mxu0
  %v479 = vadd.f32 %v88, %v478
  %v480 = vpop.f32.mrf.mxu0
  %v481 = vadd.f32 %v88, %v480
  %482 = vmatmul.bf16.gmra.mxu0 %v324
  %v483 = vpop.f32.mrf.mxu0
  %v484 = vadd.f32 %v88, %v483
  %v485 = vpop.f32.mrf.mxu0
  %v486 = vadd.f32 %v88, %v485
  %487 = vmatmul.bf16.gmra.mxu0 %v327
  %v488 = vpop.f32.mrf.mxu0
  %v489 = vadd.f32 %v88, %v488
  %v490 = vpop.f32.mrf.mxu0
  %v491 = vadd.f32 %v88, %v490
  %492 = vmatmul.bf16.gmra.mxu0 %v330
  %v493 = vpop.f32.mrf.mxu0
  %v494 = vadd.f32 %v88, %v493
  %v495 = vpop.f32.mrf.mxu0
  %v496 = vadd.f32 %v88, %v495
  %497 = vmatmul.bf16.gmra.mxu0 %v333
  %v498 = vpop.f32.mrf.mxu0
  %v499 = vadd.f32 %v88, %v498
  %v500 = vpop.f32.mrf.mxu0
  %v501 = vadd.f32 %v88, %v500
  %502 = vmatmul.bf16.gmra.mxu0 %v336
  %v503 = vpop.f32.mrf.mxu0
  %v504 = vadd.f32 %v88, %v503
  %v505 = vpop.f32.mrf.mxu0
  %v506 = vadd.f32 %v88, %v505
  %507 = vmatmul.bf16.gmra.mxu0 %v339
  %v508 = vpop.f32.mrf.mxu0
  %v509 = vadd.f32 %v88, %v508
  %v510 = vpop.f32.mrf.mxu0
  %v511 = vadd.f32 %v88, %v510
  %512 = vmatmul.bf16.gmra.mxu0 %v342
  %v513 = vpop.f32.mrf.mxu0
  %v514 = vadd.f32 %v88, %v513
  %v515 = vpop.f32.mrf.mxu0
  %v516 = vadd.f32 %v88, %v515
  %517 = vmatmul.bf16.gmra.mxu0 %v345
  %v518 = vpop.f32.mrf.mxu0
  %v519 = vadd.f32 %v88, %v518
  %v520 = vpop.f32.mrf.mxu0
  %v521 = vadd.f32 %v88, %v520
  %522 = vdwg.mxu0
  %v523 = vmax.f32 %v364, 0.0
  %v524 = vmax.f32 %v366, 0.0
  %v525 = vmax.f32 %v369, 0.0
  %v526 = vmax.f32 %v371, 0.0
  %v527 = vmax.f32 %v374, 0.0
  %v528 = vmax.f32 %v376, 0.0
  %v529 = vmax.f32 %v379, 0.0
  %v530 = vmax.f32 %v381, 0.0
  %v531 = vmax.f32 %v384, 0.0
  %v532 = vmax.f32 %v386, 0.0
  %v533 = vmax.f32 %v389, 0.0
  %v534 = vmax.f32 %v391, 0.0
  %v535 = vmax.f32 %v394, 0.0
  %v536 = vmax.f32 %v396, 0.0
  %v537 = vmax.f32 %v399, 0.0
  %v538 = vmax.f32 %v401, 0.0
  %v539 = vmax.f32 %v404, 0.0
  %v540 = vmax.f32 %v406, 0.0
  %v541 = vmax.f32 %v409, 0.0
  %v542 = vmax.f32 %v411, 0.0
  %v543 = vmax.f32 %v414, 0.0
  %v544 = vmax.f32 %v416, 0.0
  %v545 = vmax.f32 %v419, 0.0
  %v546 = vmax.f32 %v421, 0.0
  %v547 = vmax.f32 %v424, 0.0
  %v548 = vmax.f32 %v426, 0.0
  %v549 = vmax.f32 %v429, 0.0
  %v550 = vmax.f32 %v431, 0.0
  %v551 = vmax.f32 %v434, 0.0
  %v552 = vmax.f32 %v436, 0.0
  %v553 = vmax.f32 %v439, 0.0
  %v554 = vmax.f32 %v441, 0.0
  %v555 = vmax.f32 %v444, 0.0
  %v556 = vmax.f32 %v446, 0.0
  %v557 = vmax.f32 %v449, 0.0
  %v558 = vmax.f32 %v451, 0.0
  %v559 = vmax.f32 %v454, 0.0
  %v560 = vmax.f32 %v456, 0.0
  %v561 = vmax.f32 %v459, 0.0
  %v562 = vmax.f32 %v461, 0.0
  %v563 = vmax.f32 %v464, 0.0
  %v564 = vmax.f32 %v466, 0.0
  %v565 = vmax.f32 %v469, 0.0
  %v566 = vmax.f32 %v471, 0.0
  %v567 = vmax.f32 %v474, 0.0
  %v568 = vmax.f32 %v476, 0.0
  %v569 = vmax.f32 %v479, 0.0
  %v570 = vmax.f32 %v481, 0.0
  %v571 = vmax.f32 %v484, 0.0
  %v572 = vmax.f32 %v486, 0.0
  %v573 = vmax.f32 %v489, 0.0
  %v574 = vmax.f32 %v491, 0.0
  %v575 = vmax.f32 %v494, 0.0
  %v576 = vmax.f32 %v496, 0.0
  %v577 = vmax.f32 %v499, 0.0
  %v578 = vmax.f32 %v501, 0.0
  %v579 = vmax.f32 %v504, 0.0
  %v580 = vmax.f32 %v506, 0.0
  %v581 = vmax.f32 %v509, 0.0
  %v582 = vmax.f32 %v511, 0.0
  %v583 = vmax.f32 %v514, 0.0
  %v584 = vmax.f32 %v516, 0.0
  %v585 = vmax.f32 %v519, 0.0
  %v586 = vmax.f32 %v521, 0.0
  %v587 = vpack.c.bf16 %v524, %v523
  %v588 = vpack.c.bf16 %v526, %v525
  %v589 = vpack.c.bf16 %v528, %v527
  %v590 = vpack.c.bf16 %v530, %v529
  %v591 = vpack.c.bf16 %v532, %v531
  %v592 = vpack.c.bf16 %v534, %v533
  %v593 = vpack.c.bf16 %v536, %v535
  %v594 = vpack.c.bf16 %v538, %v537
  %v595 = vpack.c.bf16 %v540, %v539
  %v596 = vpack.c.bf16 %v542, %v541
  %v597 = vpack.c.bf16 %v544, %v543
  %v598 = vpack.c.bf16 %v546, %v545
  %v599 = vpack.c.bf16 %v548, %v547
  %v600 = vpack.c.bf16 %v550, %v549
  %v601 = vpack.c.bf16 %v552, %v551
  %v602 = vpack.c.bf16 %v554, %v553
  %v603 = vpack.c.bf16 %v556, %v555
  %v604 = vpack.c.bf16 %v558, %v557
  %v605 = vpack.c.bf16 %v560, %v559
  %v606 = vpack.c.bf16 %v562, %v561
  %v607 = vpack.c.bf16 %v564, %v563
  %v608 = vpack.c.bf16 %v566, %v565
  %v609 = vpack.c.bf16 %v568, %v567
  %v610 = vpack.c.bf16 %v570, %v569
  %v611 = vpack.c.bf16 %v572, %v571
  %v612 = vpack.c.bf16 %v574, %v573
  %v613 = vpack.c.bf16 %v576, %v575
  %v614 = vpack.c.bf16 %v578, %v577
  %v615 = vpack.c.bf16 %v580, %v579
  %v616 = vpack.c.bf16 %v582, %v581
  %v617 = vpack.c.bf16 %v584, %v583
  %v618 = vpack.c.bf16 %v586, %v585
  %v619 = vld [vmem:[%s3] sm:$0xf]
  %v620 = vld [vmem:[%s3 + $0x4] sm:$0xf]
  %v621 = vld [vmem:[%s3 + $0x8] sm:$0xf]
  %v622 = vld [vmem:[%s3 + $0xc] sm:$0xf]
  %v623 = vld [vmem:[%s3 + $0x10] sm:$0xf]
  %v624 = vld [vmem:[%s3 + $0x14] sm:$0xf]
  %v625 = vld [vmem:[%s3 + $0x18] sm:$0xf]
  %v626 = vld [vmem:[%s3 + $0x1c] sm:$0xf]
  %v627 = vld [vmem:[%s3 + $0x20] sm:$0xf]
  %v628 = vld [vmem:[%s3 + $0x24] sm:$0xf]
  %v629 = vld [vmem:[%s3 + $0x28] sm:$0xf]
  %v630 = vld [vmem:[%s3 + $0x2c] sm:$0xf]
  %v631 = vld [vmem:[%s3 + $0x30] sm:$0xf]
  %v632 = vld [vmem:[%s3 + $0x34] sm:$0xf]
  %v633 = vld [vmem:[%s3 + $0x38] sm:$0xf]
  %v634 = vld [vmem:[%s3 + $0x3c] sm:$0xf]
  %v635 = vld [vmem:[%s4] sm:$0x1]
  %v637 = vperm.slane %v635, 0
  %v655 = vunpack.c.l.b16 %v619
  %v656 = vunpack.c.l.b16 %v620
  %v657 = vunpack.c.l.b16 %v621
  %v658 = vunpack.c.l.b16 %v622
  %v659 = vunpack.c.l.b16 %v623
  %v660 = vunpack.c.l.b16 %v624
  %v661 = vunpack.c.l.b16 %v625
  %v662 = vunpack.c.l.b16 %v626
  %v663 = vunpack.c.l.b16 %v627
  %v664 = vunpack.c.l.b16 %v628
  %v665 = vunpack.c.l.b16 %v629
  %v666 = vunpack.c.l.b16 %v630
  %v667 = vunpack.c.l.b16 %v631
  %v668 = vunpack.c.l.b16 %v632
  %v669 = vunpack.c.l.b16 %v633
  %v670 = vunpack.c.l.b16 %v634
  %v671 = vpack.c.b16 %v656, %v655
  %v672 = vpack.c.b16 %v658, %v657
  %v673 = vpack.c.b16 %v660, %v659
  %v674 = vpack.c.b16 %v662, %v661
  %v675 = vpack.c.b16 %v664, %v663
  %v676 = vpack.c.b16 %v666, %v665
  %v677 = vpack.c.b16 %v668, %v667
  %v678 = vpack.c.b16 %v670, %v669
  %687 = vmatpush.bf16.msra.mxu0 %v678
  %688 = vmatpush.bf16.msra.mxu0 %v677
  %689 = vmatpush.bf16.msra.mxu0 %v676
  %690 = vmatpush.bf16.msra.mxu0 %v675
  %691 = vmatpush.bf16.msra.mxu0 %v674
  %692 = vmatpush.bf16.msra.mxu0 %v673
  %693 = vmatpush.bf16.msra.mxu0 %v672
  %694 = vmatpush.bf16.msra.mxu0 %v671
  %695 = vmatmul.bf16.gmra.mxu0 %v587
  %v696 = vpop.f32.mrf.mxu0
  %v697 = vadd.f32 %v637, %v696
  %v698 = vpop.f32.mrf.mxu0
  %v699 = vadd.f32 %v637, %v698
  %700 = vmatmul.bf16.gmra.mxu0 %v588
  %v701 = vpop.f32.mrf.mxu0
  %v702 = vadd.f32 %v637, %v701
  %v703 = vpop.f32.mrf.mxu0
  %v704 = vadd.f32 %v637, %v703
  %705 = vmatmul.bf16.gmra.mxu0 %v589
  %v706 = vpop.f32.mrf.mxu0
  %v707 = vadd.f32 %v637, %v706
  %v708 = vpop.f32.mrf.mxu0
  %v709 = vadd.f32 %v637, %v708
  %710 = vmatmul.bf16.gmra.mxu0 %v590
  %v711 = vpop.f32.mrf.mxu0
  %v712 = vadd.f32 %v637, %v711
  %v713 = vpop.f32.mrf.mxu0
  %v714 = vadd.f32 %v637, %v713
  %715 = vmatmul.bf16.gmra.mxu0 %v591
  %v716 = vpop.f32.mrf.mxu0
  %v717 = vadd.f32 %v637, %v716
  %v718 = vpop.f32.mrf.mxu0
  %v719 = vadd.f32 %v637, %v718
  %720 = vmatmul.bf16.gmra.mxu0 %v592
  %v721 = vpop.f32.mrf.mxu0
  %v722 = vadd.f32 %v637, %v721
  %v723 = vpop.f32.mrf.mxu0
  %v724 = vadd.f32 %v637, %v723
  %725 = vmatmul.bf16.gmra.mxu0 %v593
  %v726 = vpop.f32.mrf.mxu0
  %v727 = vadd.f32 %v637, %v726
  %v728 = vpop.f32.mrf.mxu0
  %v729 = vadd.f32 %v637, %v728
  %730 = vmatmul.bf16.gmra.mxu0 %v594
  %v731 = vpop.f32.mrf.mxu0
  %v732 = vadd.f32 %v637, %v731
  %v733 = vpop.f32.mrf.mxu0
  %v734 = vadd.f32 %v637, %v733
  %735 = vmatmul.bf16.gmra.mxu0 %v595
  %v736 = vpop.f32.mrf.mxu0
  %v737 = vadd.f32 %v637, %v736
  %v738 = vpop.f32.mrf.mxu0
  %v739 = vadd.f32 %v637, %v738
  %740 = vmatmul.bf16.gmra.mxu0 %v596
  %v741 = vpop.f32.mrf.mxu0
  %v742 = vadd.f32 %v637, %v741
  %v743 = vpop.f32.mrf.mxu0
  %v744 = vadd.f32 %v637, %v743
  %745 = vmatmul.bf16.gmra.mxu0 %v597
  %v746 = vpop.f32.mrf.mxu0
  %v747 = vadd.f32 %v637, %v746
  %v748 = vpop.f32.mrf.mxu0
  %v749 = vadd.f32 %v637, %v748
  %750 = vmatmul.bf16.gmra.mxu0 %v598
  %v751 = vpop.f32.mrf.mxu0
  %v752 = vadd.f32 %v637, %v751
  %v753 = vpop.f32.mrf.mxu0
  %v754 = vadd.f32 %v637, %v753
  %755 = vmatmul.bf16.gmra.mxu0 %v599
  %v756 = vpop.f32.mrf.mxu0
  %v757 = vadd.f32 %v637, %v756
  %v758 = vpop.f32.mrf.mxu0
  %v759 = vadd.f32 %v637, %v758
  %760 = vmatmul.bf16.gmra.mxu0 %v600
  %v761 = vpop.f32.mrf.mxu0
  %v762 = vadd.f32 %v637, %v761
  %v763 = vpop.f32.mrf.mxu0
  %v764 = vadd.f32 %v637, %v763
  %765 = vmatmul.bf16.gmra.mxu0 %v601
  %v766 = vpop.f32.mrf.mxu0
  %v767 = vadd.f32 %v637, %v766
  %v768 = vpop.f32.mrf.mxu0
  %v769 = vadd.f32 %v637, %v768
  %770 = vmatmul.bf16.gmra.mxu0 %v602
  %v771 = vpop.f32.mrf.mxu0
  %v772 = vadd.f32 %v637, %v771
  %v773 = vpop.f32.mrf.mxu0
  %v774 = vadd.f32 %v637, %v773
  %775 = vmatmul.bf16.gmra.mxu0 %v603
  %v776 = vpop.f32.mrf.mxu0
  %v777 = vadd.f32 %v637, %v776
  %v778 = vpop.f32.mrf.mxu0
  %v779 = vadd.f32 %v637, %v778
  %780 = vmatmul.bf16.gmra.mxu0 %v604
  %v781 = vpop.f32.mrf.mxu0
  %v782 = vadd.f32 %v637, %v781
  %v783 = vpop.f32.mrf.mxu0
  %v784 = vadd.f32 %v637, %v783
  %785 = vmatmul.bf16.gmra.mxu0 %v605
  %v786 = vpop.f32.mrf.mxu0
  %v787 = vadd.f32 %v637, %v786
  %v788 = vpop.f32.mrf.mxu0
  %v789 = vadd.f32 %v637, %v788
  %790 = vmatmul.bf16.gmra.mxu0 %v606
  %v791 = vpop.f32.mrf.mxu0
  %v792 = vadd.f32 %v637, %v791
  %v793 = vpop.f32.mrf.mxu0
  %v794 = vadd.f32 %v637, %v793
  %795 = vmatmul.bf16.gmra.mxu0 %v607
  %v796 = vpop.f32.mrf.mxu0
  %v797 = vadd.f32 %v637, %v796
  %v798 = vpop.f32.mrf.mxu0
  %v799 = vadd.f32 %v637, %v798
  %800 = vmatmul.bf16.gmra.mxu0 %v608
  %v801 = vpop.f32.mrf.mxu0
  %v802 = vadd.f32 %v637, %v801
  %v803 = vpop.f32.mrf.mxu0
  %v804 = vadd.f32 %v637, %v803
  %805 = vmatmul.bf16.gmra.mxu0 %v609
  %v806 = vpop.f32.mrf.mxu0
  %v807 = vadd.f32 %v637, %v806
  %v808 = vpop.f32.mrf.mxu0
  %v809 = vadd.f32 %v637, %v808
  %810 = vmatmul.bf16.gmra.mxu0 %v610
  %v811 = vpop.f32.mrf.mxu0
  %v812 = vadd.f32 %v637, %v811
  %v813 = vpop.f32.mrf.mxu0
  %v814 = vadd.f32 %v637, %v813
  %815 = vmatmul.bf16.gmra.mxu0 %v611
  %v816 = vpop.f32.mrf.mxu0
  %v817 = vadd.f32 %v637, %v816
  %v818 = vpop.f32.mrf.mxu0
  %v819 = vadd.f32 %v637, %v818
  %820 = vmatmul.bf16.gmra.mxu0 %v612
  %v821 = vpop.f32.mrf.mxu0
  %v822 = vadd.f32 %v637, %v821
  %v823 = vpop.f32.mrf.mxu0
  %v824 = vadd.f32 %v637, %v823
  %825 = vmatmul.bf16.gmra.mxu0 %v613
  %v826 = vpop.f32.mrf.mxu0
  %v827 = vadd.f32 %v637, %v826
  %v828 = vpop.f32.mrf.mxu0
  %v829 = vadd.f32 %v637, %v828
  %830 = vmatmul.bf16.gmra.mxu0 %v614
  %v831 = vpop.f32.mrf.mxu0
  %v832 = vadd.f32 %v637, %v831
  %v833 = vpop.f32.mrf.mxu0
  %v834 = vadd.f32 %v637, %v833
  %835 = vmatmul.bf16.gmra.mxu0 %v615
  %v836 = vpop.f32.mrf.mxu0
  %v837 = vadd.f32 %v637, %v836
  %v838 = vpop.f32.mrf.mxu0
  %v839 = vadd.f32 %v637, %v838
  %840 = vmatmul.bf16.gmra.mxu0 %v616
  %v841 = vpop.f32.mrf.mxu0
  %v842 = vadd.f32 %v637, %v841
  %v843 = vpop.f32.mrf.mxu0
  %v844 = vadd.f32 %v637, %v843
  %845 = vmatmul.bf16.gmra.mxu0 %v617
  %v846 = vpop.f32.mrf.mxu0
  %v847 = vadd.f32 %v637, %v846
  %v848 = vpop.f32.mrf.mxu0
  %v849 = vadd.f32 %v637, %v848
  %850 = vmatmul.bf16.gmra.mxu0 %v618
  %v851 = vpop.f32.mrf.mxu0
  %v852 = vadd.f32 %v637, %v851
  %v853 = vpop.f32.mrf.mxu0
  %v854 = vadd.f32 %v637, %v853
  %855 = vdwg.mxu0
  %v856 = vmax.f32 %v697, 0.0
  %v857 = vmax.f32 %v699, 0.0
  %v858 = vmax.f32 %v702, 0.0
  %v859 = vmax.f32 %v704, 0.0
  %v860 = vmax.f32 %v707, 0.0
  %v861 = vmax.f32 %v709, 0.0
  %v862 = vmax.f32 %v712, 0.0
  %v863 = vmax.f32 %v714, 0.0
  %v864 = vmax.f32 %v717, 0.0
  %v865 = vmax.f32 %v719, 0.0
  %v866 = vmax.f32 %v722, 0.0
  %v867 = vmax.f32 %v724, 0.0
  %v868 = vmax.f32 %v727, 0.0
  %v869 = vmax.f32 %v729, 0.0
  %v870 = vmax.f32 %v732, 0.0
  %v871 = vmax.f32 %v734, 0.0
  %v872 = vmax.f32 %v737, 0.0
  %v873 = vmax.f32 %v739, 0.0
  %v874 = vmax.f32 %v742, 0.0
  %v875 = vmax.f32 %v744, 0.0
  %v876 = vmax.f32 %v747, 0.0
  %v877 = vmax.f32 %v749, 0.0
  %v878 = vmax.f32 %v752, 0.0
  %v879 = vmax.f32 %v754, 0.0
  %v880 = vmax.f32 %v757, 0.0
  %v881 = vmax.f32 %v759, 0.0
  %v882 = vmax.f32 %v762, 0.0
  %v883 = vmax.f32 %v764, 0.0
  %v884 = vmax.f32 %v767, 0.0
  %v885 = vmax.f32 %v769, 0.0
  %v886 = vmax.f32 %v772, 0.0
  %v887 = vmax.f32 %v774, 0.0
  %v888 = vmax.f32 %v777, 0.0
  %v889 = vmax.f32 %v779, 0.0
  %v890 = vmax.f32 %v782, 0.0
  %v891 = vmax.f32 %v784, 0.0
  %v892 = vmax.f32 %v787, 0.0
  %v893 = vmax.f32 %v789, 0.0
  %v894 = vmax.f32 %v792, 0.0
  %v895 = vmax.f32 %v794, 0.0
  %v896 = vmax.f32 %v797, 0.0
  %v897 = vmax.f32 %v799, 0.0
  %v898 = vmax.f32 %v802, 0.0
  %v899 = vmax.f32 %v804, 0.0
  %v900 = vmax.f32 %v807, 0.0
  %v901 = vmax.f32 %v809, 0.0
  %v902 = vmax.f32 %v812, 0.0
  %v903 = vmax.f32 %v814, 0.0
  %v904 = vmax.f32 %v817, 0.0
  %v905 = vmax.f32 %v819, 0.0
  %v906 = vmax.f32 %v822, 0.0
  %v907 = vmax.f32 %v824, 0.0
  %v908 = vmax.f32 %v827, 0.0
  %v909 = vmax.f32 %v829, 0.0
  %v910 = vmax.f32 %v832, 0.0
  %v911 = vmax.f32 %v834, 0.0
  %v912 = vmax.f32 %v837, 0.0
  %v913 = vmax.f32 %v839, 0.0
  %v914 = vmax.f32 %v842, 0.0
  %v915 = vmax.f32 %v844, 0.0
  %v916 = vmax.f32 %v847, 0.0
  %v917 = vmax.f32 %v849, 0.0
  %v918 = vmax.f32 %v852, 0.0
  %v919 = vmax.f32 %v854, 0.0
  %v920 = vmax.f32 %v856, %v857
  %v921 = vmax.f32 %v920, %v858
  %v922 = vmax.f32 %v921, %v859
  %v923 = vmax.f32 %v922, %v860
  %v924 = vmax.f32 %v923, %v861
  %v925 = vmax.f32 %v924, %v862
  %v926 = vmax.f32 %v925, %v863
  %v927 = vrot.slane %v926, 4
  %v928 = vmax.f32 %v926, %v927
  %v929 = vrot.slane %v928, 2
  %v930 = vmax.f32 %v928, %v929
  %v931 = vrot.slane %v930, 1
  %v932 = vmax.f32 %v930, %v931
  %v933 = vmax.f32 %v864, %v865
  %v934 = vmax.f32 %v933, %v866
  %v935 = vmax.f32 %v934, %v867
  %v936 = vmax.f32 %v935, %v868
  %v937 = vmax.f32 %v936, %v869
  %v938 = vmax.f32 %v937, %v870
  %v939 = vmax.f32 %v938, %v871
  %v940 = vrot.slane %v939, 4
  %v941 = vmax.f32 %v939, %v940
  %v942 = vrot.slane %v941, 2
  %v943 = vmax.f32 %v941, %v942
  %v944 = vrot.slane %v943, 1
  %v945 = vmax.f32 %v943, %v944
  %v946 = vmax.f32 %v872, %v873
  %v947 = vmax.f32 %v946, %v874
  %v948 = vmax.f32 %v947, %v875
  %v949 = vmax.f32 %v948, %v876
  %v950 = vmax.f32 %v949, %v877
  %v951 = vmax.f32 %v950, %v878
  %v952 = vmax.f32 %v951, %v879
  %v953 = vrot.slane %v952, 4
  %v954 = vmax.f32 %v952, %v953
  %v955 = vrot.slane %v954, 2
  %v956 = vmax.f32 %v954, %v955
  %v957 = vrot.slane %v956, 1
  %v958 = vmax.f32 %v956, %v957
  %v959 = vmax.f32 %v880, %v881
  %v960 = vmax.f32 %v959, %v882
  %v961 = vmax.f32 %v960, %v883
  %v962 = vmax.f32 %v961, %v884
  %v963 = vmax.f32 %v962, %v885
  %v964 = vmax.f32 %v963, %v886
  %v965 = vmax.f32 %v964, %v887
  %v966 = vrot.slane %v965, 4
  %v967 = vmax.f32 %v965, %v966
  %v968 = vrot.slane %v967, 2
  %v969 = vmax.f32 %v967, %v968
  %v970 = vrot.slane %v969, 1
  %v971 = vmax.f32 %v969, %v970
  %v972 = vmax.f32 %v888, %v889
  %v973 = vmax.f32 %v972, %v890
  %v974 = vmax.f32 %v973, %v891
  %v975 = vmax.f32 %v974, %v892
  %v976 = vmax.f32 %v975, %v893
  %v977 = vmax.f32 %v976, %v894
  %v978 = vmax.f32 %v977, %v895
  %v979 = vrot.slane %v978, 4
  %v980 = vmax.f32 %v978, %v979
  %v981 = vrot.slane %v980, 2
  %v982 = vmax.f32 %v980, %v981
  %v983 = vrot.slane %v982, 1
  %v984 = vmax.f32 %v982, %v983
  %v985 = vmax.f32 %v896, %v897
  %v986 = vmax.f32 %v985, %v898
  %v987 = vmax.f32 %v986, %v899
  %v988 = vmax.f32 %v987, %v900
  %v989 = vmax.f32 %v988, %v901
  %v990 = vmax.f32 %v989, %v902
  %v991 = vmax.f32 %v990, %v903
  %v992 = vrot.slane %v991, 4
  %v993 = vmax.f32 %v991, %v992
  %v994 = vrot.slane %v993, 2
  %v995 = vmax.f32 %v993, %v994
  %v996 = vrot.slane %v995, 1
  %v997 = vmax.f32 %v995, %v996
  %v998 = vmax.f32 %v904, %v905
  %v999 = vmax.f32 %v998, %v906
  %v1000 = vmax.f32 %v999, %v907
  %v1001 = vmax.f32 %v1000, %v908
  %v1002 = vmax.f32 %v1001, %v909
  %v1003 = vmax.f32 %v1002, %v910
  %v1004 = vmax.f32 %v1003, %v911
  %v1005 = vrot.slane %v1004, 4
  %v1006 = vmax.f32 %v1004, %v1005
  %v1007 = vrot.slane %v1006, 2
  %v1008 = vmax.f32 %v1006, %v1007
  %v1009 = vrot.slane %v1008, 1
  %v1010 = vmax.f32 %v1008, %v1009
  %v1011 = vmax.f32 %v912, %v913
  %v1012 = vmax.f32 %v1011, %v914
  %v1013 = vmax.f32 %v1012, %v915
  %v1014 = vmax.f32 %v1013, %v916
  %v1015 = vmax.f32 %v1014, %v917
  %v1016 = vmax.f32 %v1015, %v918
  %v1017 = vmax.f32 %v1016, %v919
  %v1018 = vrot.slane %v1017, 4
  %v1019 = vmax.f32 %v1017, %v1018
  %v1020 = vrot.slane %v1019, 2
  %v1021 = vmax.f32 %v1019, %v1020
  %v1022 = vrot.slane %v1021, 1
  %v1023 = vmax.f32 %v1021, %v1022
  %p1024 = scmp.eq.s32.totalorder 0, 0
  // Predicated region
  $region22: #{pointnet_forward_raw.1} parent=0 // pred_check
    %p1025 = pneg %p1024
  $region23: #{pointnet_forward_raw.1} parent=0 // pred_check_branch
    %1027 = sbr.rel (%p1025) target = $region25
  $region24: #{pointnet_forward_raw.1} parent=0 // pred_region
    %vm1036 = vcmask 1041409
    %v1037 = vsel %vm1036, %v945, %v932
    %vm1038 = vcmask 1042434
    %v1039 = vsel %vm1038, %v958, %v1037
    %vm1040 = vcmask 1043459
    %v1041 = vsel %vm1040, %v971, %v1039
    %vm1042 = vcmask 1044484
    %v1043 = vsel %vm1042, %v984, %v1041
    %vm1044 = vcmask 1045509
    %v1045 = vsel %vm1044, %v997, %v1043
    %vm1046 = vcmask 1046534
    %v1047 = vsel %vm1046, %v1010, %v1045
    %vm1048 = vcmask 1047559
    %v1049 = vsel %vm1048, %v1023, %v1047
    %1051 = vst [vmem:[%s5] sm:$0xff] %v1049
  $region25: #{pointnet_forward_raw.1} parent=0 // pred_fallthru
    _
  %p1052 = scmp.ne.s32.totalorder 0, 0
  // Predicated region
  $region26: #{pointnet_forward_raw.1} parent=0 // pred_check
    %p1053 = pneg %p1052
  $region27: #{pointnet_forward_raw.1} parent=0 // pred_check_branch
    %1055 = sbr.rel (%p1053) target = $region29
  $region28: #{pointnet_forward_raw.1} parent=0 // pred_region
    %v1056 = vld [vmem:[%s5] sm:$0xff]
    %vm1065 = vcmask 1041409
    %v1066 = vsel %vm1065, %v945, %v932
    %vm1067 = vcmask 1042434
    %v1068 = vsel %vm1067, %v958, %v1066
    %vm1069 = vcmask 1043459
    %v1070 = vsel %vm1069, %v971, %v1068
    %vm1071 = vcmask 1044484
    %v1072 = vsel %vm1071, %v984, %v1070
    %vm1073 = vcmask 1045509
    %v1074 = vsel %vm1073, %v997, %v1072
    %vm1075 = vcmask 1046534
    %v1076 = vsel %vm1075, %v1010, %v1074
    %vm1077 = vcmask 1047559
    %v1078 = vsel %vm1077, %v1023, %v1076
    %v1080 = vmax.f32 %v1056, %v1078
    %1081 = vst [vmem:[%s5] sm:$0xff] %v1080
  $region29: #{pointnet_forward_raw.1} parent=0 // pred_fallthru
    _
  // Predicated region
  $region30: #{pointnet_forward_raw.1} parent=0 // pred_check
    _
  $region31: #{pointnet_forward_raw.1} parent=0 // pred_check_branch
    %1083 = sbr.rel (0) target = $region33
  $region32: #{pointnet_forward_raw.1} parent=0 // pred_region
    _
  $region33: #{pointnet_forward_raw.1} parent=0 // pred_fallthru
    _
  // Predicated region
  $region34: #{pointnet_forward_raw.1} parent=0 // pred_check
    _
  $region35: #{pointnet_forward_raw.1} parent=0 // pred_check_branch
    %1085 = sbr.rel (0) target = $region37
  $region36: #{pointnet_forward_raw.1} parent=0 // pred_region
    _
  $region37: #{pointnet_forward_raw.1} parent=0 // pred_fallthru
    _

</llo_original>
